<compile_context>
chip_gen: v7x
topology: tpu7x:2x2x1
jax: 0.10.0
libtpu: 0.0.40
codegen_flags: <defaults>
</compile_context>

<pallas_src>
import jax
import jax.numpy as jnp
import numpy as np
from jax.experimental import pallas as pl
from jax.experimental.pallas import tpu as pltpu

# ---------------- sizes (small, consistent with the module) ----------------
B = 2            # batch
S = 16           # llm sequence length
H_LLM = 128      # llm hidden size
H_G = 64         # gformer (roberta) hidden size (!= H_LLM -> projector path)
Q = 4            # num_query_tokens == length of the [g_patch] span
VOCAB = 32       # tiny llm vocab
GRAPH_PAD_ID = VOCAB - 1    # id of DEFAULT_GRAPH_PAD_TOKEN '[g_patch]'
LN_EPS = 1e-5               # nn.LayerNorm default eps
K_FUSED = VOCAB + H_G       # contraction dim of the single fused matmul


# ---------------- single fused kernel: gather + projector/LN + splice ----------------
def _fused_kernel(ids_ref, rhs_ref, qpad_ref, bgb_ref, o_ref):
    ids = ids_ref[...]                                            # (B*S, 1) int32

    # (a) ONE MXU push: block-diagonal LHS [[token one-hot, 0], [0, query tokens]] against
    #     RHS [[embed table], [projector W]].  precision=HIGHEST keeps the one-hot gather
    #     bit-faithful to the f32 table rows (1.0 splits exactly; zero terms are exact).
    col = jax.lax.broadcasted_iota(jnp.int32, (B * S, K_FUSED), 1)
    onehot = (col == ids).astype(jnp.float32)                     # cols >= VOCAB never match
    lhs = jnp.concatenate([onehot, qpad_ref[...]], axis=0)        # (B*S + Q, K_FUSED)
    fused = jnp.dot(lhs, rhs_ref[...],
                    preferred_element_type=jnp.float32,
                    precision=jax.lax.Precision.HIGHEST)          # (B*S + Q, H_LLM)
    emb = fused[:B * S, :]                                        # token embeddings (gather)
    y = fused[B * S:, :]                                          # query @ W (pre-bias / pre-LN)

    # (b) projector bias + LayerNorm, computed ONCE on (Q, H_LLM): query tokens are
    #     batch-independent in this path.
    bgb = bgb_ref[...]                                            # (3, H_LLM): bias, gamma, beta
    y = y + bgb[0:1, :]
    mu = jnp.mean(y, axis=-1, keepdims=True)
    var = jnp.mean((y - mu) ** 2, axis=-1, keepdims=True)
    res = (y - mu) * jax.lax.rsqrt(var + LN_EPS) * bgb[1:2, :] + bgb[2:3, :]   # (Q, H_LLM)

    # (c) splice mask derived entirely in-kernel from ids == [g_patch] (no argmax, no scalar
    #     prefetch).  off = position within the contiguous span; rows with no span are never
    #     selected and keep their token embedding.
    is_pad = ids == GRAPH_PAD_ID                                  # (B*S, 1)
    ids3 = ids.reshape(B, S, 1)                                   # free: lane dim (=1) unchanged
    s_iota = jax.lax.broadcasted_iota(jnp.int32, (B, S, 1), 1)
    st = jnp.min(jnp.where(ids3 == GRAPH_PAD_ID, s_iota, S),
                 axis=1, keepdims=True)                           # (B, 1, 1) span start per row
    off = (s_iota - st).reshape(B * S, 1)                         # (B*S, 1)

    # (d) register-level select-merge, then exactly ONE full lane-dense store.
    #     torch: new_inputs_embeds = zeros; span rows get `+= res` onto zeros -> overwrite.
    out = emb
    for k in range(Q):                                            # Q static & tiny
        out = jnp.where(jnp.logical_and(is_pad, off == k), res[k:k + 1, :], out)
    o_ref[...] = out.astype(o_ref.dtype)


# ---------------- one-time parameter repacking (model-load time, not per call) ----------------
def prepare_params(params):
    rhs = jnp.concatenate([params["embed"].astype(jnp.float32),
                           params["w"].astype(jnp.float32)], axis=0)            # (VOCAB+H_G, H_LLM)
    qpad = jnp.concatenate([jnp.zeros((Q, VOCAB), jnp.float32),
                            params["qtok"].astype(jnp.float32)], axis=1)        # (Q, VOCAB+H_G)
    bgb = jnp.stack([params["b"], params["gamma"], params["beta"]], axis=0)     # (3, H_LLM)
    return {"rhs": rhs, "qpad": qpad, "bgb": bgb}


# ---------------- wrapper = LLaSA.construct_inputs_embeds ----------------
def construct_inputs_embeds(input_ids, prepped):
    # (B,S)->(B*S,1) is a free row-major reshape; lane-sparse layout accepted (32 ids total) —
    # it is the orientation the in-kernel compares need and ids is the only token input.
    ids_flat = input_ids.reshape(B * S, 1).astype(jnp.int32)
    vmem = pl.BlockSpec(memory_space=pltpu.MemorySpace.VMEM)
    out = pl.pallas_call(
        _fused_kernel,
        out_shape=jax.ShapeDtypeStruct((B * S, H_LLM), jnp.float32),
        in_specs=[vmem, vmem, vmem, vmem],
        out_specs=vmem,
    )(ids_flat, prepped["rhs"], prepped["qpad"], prepped["bgb"])
    return out.reshape(B, S, H_LLM)


# ---------------- pure-JAX reference for correctness ----------------
def reference(input_ids, params):
    emb = params["embed"][input_ids]                              # (B, S, H_LLM)
    q = params["qtok"].astype(jnp.float32)                        # (Q, H_G)
    y = jnp.dot(q, params["w"], precision=jax.lax.Precision.HIGHEST) + params["b"]
    mu = y.mean(-1, keepdims=True)
    var = ((y - mu) ** 2).mean(-1, keepdims=True)
    res = (y - mu) / jnp.sqrt(var + LN_EPS) * params["gamma"] + params["beta"]  # (Q, H_LLM)
    st = jnp.argmax((input_ids == GRAPH_PAD_ID).astype(jnp.int32), axis=1)
    rows = [jax.lax.dynamic_update_slice(emb[i], res, (st[i], 0)) for i in range(B)]
    return jnp.stack(rows)


if __name__ == "__main__":
    key = jax.random.PRNGKey(0)
    k_emb, k_q, k_w, k_b, k_ids = jax.random.split(key, 5)

    params = {
        "embed": jax.random.normal(k_emb, (VOCAB, H_LLM), jnp.float32) * 0.02,
        "qtok": jax.random.normal(k_q, (Q, H_G), jnp.float32) * 0.02,
        "w": jax.random.normal(k_w, (H_G, H_LLM), jnp.float32) * 0.02,   # projector weight (H_G, H_LLM)
        "b": jax.random.normal(k_b, (H_LLM,), jnp.float32) * 0.02,
        "gamma": jnp.ones((H_LLM,), jnp.float32),
        "beta": jnp.zeros((H_LLM,), jnp.float32),
    }

    # input_ids with a contiguous [g_patch] span of length Q in each row
    ids = jax.random.randint(k_ids, (B, S), 0, VOCAB - 1).astype(jnp.int32)
    ids = ids.at[0, 3:3 + Q].set(GRAPH_PAD_ID)
    ids = ids.at[1, 8:8 + Q].set(GRAPH_PAD_ID)

    prepped = prepare_params(params)                # one-time, model-load-time repack
    run = jax.jit(construct_inputs_embeds)

    out = jax.block_until_ready(run(ids, prepped))
    ref = jax.block_until_ready(reference(ids, params))
    np.testing.assert_allclose(np.asarray(out), np.asarray(ref), rtol=1e-5, atol=1e-5)
    print("KERNEL_OK")
</pallas_src>

<mosaic_0001>
module attributes {stable_mosaic.version = 11 : i64} {
  func.func @_fused_kernel(%arg0: memref<32x1xi32, #tpu.memory_space<vmem>>, %arg1: memref<96x128xf32, #tpu.memory_space<vmem>>, %arg2: memref<4x96xf32, #tpu.memory_space<vmem>>, %arg3: memref<3x128xf32, #tpu.memory_space<vmem>>, %arg4: memref<32x128xf32, #tpu.memory_space<vmem>>) attributes {dimension_semantics = [], scalar_prefetch = 0 : i64, scratch_operands = 0 : i64, tpu.core_type = #tpu.core_type<tc>} {
    %c0 = arith.constant 0 : index
    %c0_0 = arith.constant 0 : index
    %0 = vector.load %arg0[%c0, %c0_0] : memref<32x1xi32, #tpu.memory_space<vmem>>, vector<32x1xi32>
    %1 = tpu.iota {dimensions = array<i32: 1>} : vector<32x96xi32>
    %2 = vector.broadcast %0 : vector<32x1xi32> to vector<32x96xi32>
    %3 = arith.cmpi eq, %1, %2 : vector<32x96xi32>
    %4 = arith.extui %3 : vector<32x96xi1> to vector<32x96xi32>
    %5 = arith.sitofp %4 : vector<32x96xi32> to vector<32x96xf32>
    %c0_1 = arith.constant 0 : index
    %c0_2 = arith.constant 0 : index
    %6 = vector.load %arg2[%c0_1, %c0_2] : memref<4x96xf32, #tpu.memory_space<vmem>>, vector<4x96xf32>
    %7 = tpu.concatenate %5, %6 in 0 : vector<32x96xf32>, vector<4x96xf32> -> vector<36x96xf32>
    %c0_3 = arith.constant 0 : index
    %c0_4 = arith.constant 0 : index
    %8 = vector.load %arg1[%c0_3, %c0_4] : memref<96x128xf32, #tpu.memory_space<vmem>>, vector<96x128xf32>
    %cst = arith.constant dense<0.000000e+00> : vector<36x128xf32>
    %9 = tpu.matmul %7, %8, %cst {dimension_numbers = #tpu.dot_dimension_numbers<[1], [0], [0], [1], [0, 0, 1, 1], [], []>, precision = #tpu.contract_precision<fp32>} : vector<36x96xf32>, vector<96x128xf32>, vector<36x128xf32> -> vector<36x128xf32>
    %10 = vector.extract_strided_slice %9 {offsets = [0, 0], sizes = [32, 128], strides = [1, 1]} : vector<36x128xf32> to vector<32x128xf32>
    %11 = vector.extract_strided_slice %9 {offsets = [32, 0], sizes = [4, 128], strides = [1, 1]} : vector<36x128xf32> to vector<4x128xf32>
    %c0_5 = arith.constant 0 : index
    %c0_6 = arith.constant 0 : index
    %12 = vector.load %arg3[%c0_5, %c0_6] : memref<3x128xf32, #tpu.memory_space<vmem>>, vector<3x128xf32>
    %13 = vector.extract_strided_slice %12 {offsets = [0, 0], sizes = [1, 128], strides = [1, 1]} : vector<3x128xf32> to vector<1x128xf32>
    %14 = vector.broadcast %13 : vector<1x128xf32> to vector<4x128xf32>
    %15 = arith.addf %11, %14 : vector<4x128xf32>
    %cst_7 = arith.constant dense<0.000000e+00> : vector<4xf32>
    %16 = vector.multi_reduction <add>, %15, %cst_7 [1] : vector<4x128xf32> to vector<4xf32>
    %17 = vector.shape_cast %16 : vector<4xf32> to vector<4x1xf32>
    %cst_8 = arith.constant 1.280000e+02 : f32
    %18 = vector.broadcast %cst_8 : f32 to vector<4x1xf32>
    %19 = arith.divf %17, %18 : vector<4x1xf32>
    %20 = vector.broadcast %19 : vector<4x1xf32> to vector<4x128xf32>
    %21 = arith.subf %15, %20 : vector<4x128xf32>
    %22 = arith.mulf %21, %21 : vector<4x128xf32>
    %cst_9 = arith.constant dense<0.000000e+00> : vector<4xf32>
    %23 = vector.multi_reduction <add>, %22, %cst_9 [1] : vector<4x128xf32> to vector<4xf32>
    %24 = vector.shape_cast %23 : vector<4xf32> to vector<4x1xf32>
    %cst_10 = arith.constant 1.280000e+02 : f32
    %25 = vector.broadcast %cst_10 : f32 to vector<4x1xf32>
    %26 = arith.divf %24, %25 : vector<4x1xf32>
    %27 = vector.broadcast %19 : vector<4x1xf32> to vector<4x128xf32>
    %28 = arith.subf %15, %27 : vector<4x128xf32>
    %cst_11 = arith.constant 9.99999974E-6 : f32
    %29 = vector.broadcast %cst_11 : f32 to vector<4x1xf32>
    %30 = arith.addf %26, %29 : vector<4x1xf32>
    %31 = math.rsqrt %30 : vector<4x1xf32>
    %32 = vector.broadcast %31 : vector<4x1xf32> to vector<4x128xf32>
    %33 = arith.mulf %28, %32 : vector<4x128xf32>
    %34 = vector.extract_strided_slice %12 {offsets = [1, 0], sizes = [1, 128], strides = [1, 1]} : vector<3x128xf32> to vector<1x128xf32>
    %35 = vector.broadcast %34 : vector<1x128xf32> to vector<4x128xf32>
    %36 = arith.mulf %33, %35 : vector<4x128xf32>
    %37 = vector.extract_strided_slice %12 {offsets = [2, 0], sizes = [1, 128], strides = [1, 1]} : vector<3x128xf32> to vector<1x128xf32>
    %38 = vector.broadcast %37 : vector<1x128xf32> to vector<4x128xf32>
    %39 = arith.addf %36, %38 : vector<4x128xf32>
    %c31_i32 = arith.constant 31 : i32
    %40 = vector.broadcast %c31_i32 : i32 to vector<32x1xi32>
    %41 = arith.cmpi eq, %0, %40 : vector<32x1xi32>
    %42 = vector.shape_cast %0 : vector<32x1xi32> to vector<2x16x1xi32>
    %43 = tpu.iota {dimensions = array<i32: 1>} : vector<2x16x1xi32>
    %c31_i32_12 = arith.constant 31 : i32
    %44 = vector.broadcast %c31_i32_12 : i32 to vector<2x16x1xi32>
    %45 = arith.cmpi eq, %42, %44 : vector<2x16x1xi32>
    %c16_i32 = arith.constant 16 : i32
    %46 = vector.broadcast %c16_i32 : i32 to vector<2x16x1xi32>
    %47 = arith.select %45, %43, %46 : vector<2x16x1xi1>, vector<2x16x1xi32>
    %cst_13 = arith.constant dense<2147483647> : vector<2x1xi32>
    %48 = vector.multi_reduction <minsi>, %47, %cst_13 [1] : vector<2x16x1xi32> to vector<2x1xi32>
    %49 = vector.shape_cast %48 : vector<2x1xi32> to vector<2x1x1xi32>
    %50 = vector.broadcast %49 : vector<2x1x1xi32> to vector<2x16x1xi32>
    %51 = arith.subi %43, %50 : vector<2x16x1xi32>
    %52 = vector.shape_cast %51 : vector<2x16x1xi32> to vector<32x1xi32>
    %c0_i32 = arith.constant 0 : i32
    %53 = vector.broadcast %c0_i32 : i32 to vector<32x1xi32>
    %54 = arith.cmpi eq, %52, %53 : vector<32x1xi32>
    %55 = arith.andi %41, %54 : vector<32x1xi1>
    %56 = vector.extract_strided_slice %39 {offsets = [0, 0], sizes = [1, 128], strides = [1, 1]} : vector<4x128xf32> to vector<1x128xf32>
    %57 = vector.shape_cast %55 : vector<32x1xi1> to vector<32x1xi1>
    %58 = vector.broadcast %57 : vector<32x1xi1> to vector<32x128xi1>
    %59 = vector.shape_cast %56 : vector<1x128xf32> to vector<1x128xf32>
    %60 = vector.broadcast %59 : vector<1x128xf32> to vector<32x128xf32>
    %61 = arith.select %58, %60, %10 : vector<32x128xi1>, vector<32x128xf32>
    %c1_i32 = arith.constant 1 : i32
    %62 = vector.broadcast %c1_i32 : i32 to vector<32x1xi32>
    %63 = arith.cmpi eq, %52, %62 : vector<32x1xi32>
    %64 = arith.andi %41, %63 : vector<32x1xi1>
    %65 = vector.extract_strided_slice %39 {offsets = [1, 0], sizes = [1, 128], strides = [1, 1]} : vector<4x128xf32> to vector<1x128xf32>
    %66 = vector.shape_cast %64 : vector<32x1xi1> to vector<32x1xi1>
    %67 = vector.broadcast %66 : vector<32x1xi1> to vector<32x128xi1>
    %68 = vector.shape_cast %65 : vector<1x128xf32> to vector<1x128xf32>
    %69 = vector.broadcast %68 : vector<1x128xf32> to vector<32x128xf32>
    %70 = arith.select %67, %69, %61 : vector<32x128xi1>, vector<32x128xf32>
    %c2_i32 = arith.constant 2 : i32
    %71 = vector.broadcast %c2_i32 : i32 to vector<32x1xi32>
    %72 = arith.cmpi eq, %52, %71 : vector<32x1xi32>
    %73 = arith.andi %41, %72 : vector<32x1xi1>
    %74 = vector.extract_strided_slice %39 {offsets = [2, 0], sizes = [1, 128], strides = [1, 1]} : vector<4x128xf32> to vector<1x128xf32>
    %75 = vector.shape_cast %73 : vector<32x1xi1> to vector<32x1xi1>
    %76 = vector.broadcast %75 : vector<32x1xi1> to vector<32x128xi1>
    %77 = vector.shape_cast %74 : vector<1x128xf32> to vector<1x128xf32>
    %78 = vector.broadcast %77 : vector<1x128xf32> to vector<32x128xf32>
    %79 = arith.select %76, %78, %70 : vector<32x128xi1>, vector<32x128xf32>
    %c3_i32 = arith.constant 3 : i32
    %80 = vector.broadcast %c3_i32 : i32 to vector<32x1xi32>
    %81 = arith.cmpi eq, %52, %80 : vector<32x1xi32>
    %82 = arith.andi %41, %81 : vector<32x1xi1>
    %83 = vector.extract_strided_slice %39 {offsets = [3, 0], sizes = [1, 128], strides = [1, 1]} : vector<4x128xf32> to vector<1x128xf32>
    %84 = vector.shape_cast %82 : vector<32x1xi1> to vector<32x1xi1>
    %85 = vector.broadcast %84 : vector<32x1xi1> to vector<32x128xi1>
    %86 = vector.shape_cast %83 : vector<1x128xf32> to vector<1x128xf32>
    %87 = vector.broadcast %86 : vector<1x128xf32> to vector<32x128xf32>
    %88 = arith.select %85, %87, %79 : vector<32x128xi1>, vector<32x128xf32>
    %c0_14 = arith.constant 0 : index
    %c0_15 = arith.constant 0 : index
    %89 = vector.load %arg4[%c0_14, %c0_15] : memref<32x128xf32, #tpu.memory_space<vmem>>, vector<32x128xf32>
    tpu.vector_store %arg4[%c0_14, %c0_15], %88 {strides = array<i32>} : memref<32x128xf32, #tpu.memory_space<vmem>>, vector<32x128xf32>,
    return
  }
}

</mosaic_0001>

<llo_original>
// kernel: construct_inputs_embeds.1
$region0: #{construct_inputs_embeds.1}
  #allocation0 [shape = 'u32[]', space=smem, size = 0x4, offset = 0x4, fixed_abs, tag = 'smem constant byte address 0x4 - core index']
  #allocation1 [shape = 'u32[144,128]{1,0:T(1,128)}', space=vmem, size = 0x12000, scoped, tag = 'internal scratch']
  %s0 = inlined_call_operand.vmem [shape: s32[32,1], index: 0, kind: input, shape index: {}]
  %s1 = inlined_call_operand.hbm [shape: f32[96,128], index: 1, kind: input, shape index: {}]
  %s2 = inlined_call_operand.vmem [shape: f32[4,96], index: 2, kind: input, shape index: {}]
  %s3 = inlined_call_operand.vmem [shape: f32[3,128], index: 3, kind: input, shape index: {}]
  %s4 = inlined_call_operand.hbm [shape: f32[32,128], index: 4, kind: output, shape index: {}]
  %s5 = sld [smem:[#allocation0]]
  $region30: #{construct_inputs_embeds.1} parent=0
    _
  %s7 = ssub.s32 1, %s5
  %s8 = scalar_select 0, %s7, %s5
  $region1: #{construct_inputs_embeds.1} parent=0
    #allocation2 [shape = 'u8[49152]{0}', space=vmem, size = 0xc000, scoped, tag = 'input window, operand 1, single buffered']
    #allocation3 [shape = 's32[1]{0}', space=sflag, size = 0x4, scoped, tag = 'scoped memory for construct_inputs_embeds.1']
    #allocation4 [shape = 's32[1]{0}', space=sflag, size = 0x4, scoped, tag = 'scoped memory for construct_inputs_embeds.1']
    #allocation5 [shape = 'u8[16384]{0}', space=vmem, size = 0x4000, scoped, tag = 'output window, operand 0, single buffered']
    %9 = vsyncpa [#allocation3], 0
    %10 = vsyncpa [#allocation4], 0
    // Predicated region
    $region2: #{construct_inputs_embeds.1} parent=1 // pred_check
      _
    $region3: #{construct_inputs_embeds.1} parent=1 // pred_check_branch
      %12 = sbr.rel (0) target = $region5
    $region4: #{construct_inputs_embeds.1} parent=1 // pred_region
      _
    $region5: #{construct_inputs_embeds.1} parent=1 // pred_fallthru
      _
    // Predicated region
    $region6: #{construct_inputs_embeds.1} parent=1 // pred_check
      _
    $region7: #{construct_inputs_embeds.1} parent=1 // pred_check_branch
      %14 = sbr.rel (0) target = $region9
    $region8: #{construct_inputs_embeds.1} parent=1 // pred_region
      %s16 = ssub.s32 1536, 1536
      %17 = vsyncadd [#allocation3], %s16
      %s18 = sshll.u32 [#allocation2], 4
      %s19 = int_to_ptr.vmem [resolvable:$true] %s18
      %24 = dma.hbm_to_vmem [thread:$0]  %s1, 1536, %s19, [#allocation3], 128, 128, 8
    $region9: #{construct_inputs_embeds.1} parent=1 // pred_fallthru
      _
    // Predicated region
    $region10: #{construct_inputs_embeds.1} parent=1 // pred_check
      _
    $region11: #{construct_inputs_embeds.1} parent=1 // pred_check_branch
      %26 = sbr.rel (0) target = $region13
    $region12: #{construct_inputs_embeds.1} parent=1 // pred_region
      _
    $region13: #{construct_inputs_embeds.1} parent=1 // pred_fallthru
      _
    // Predicated region
    $region14: #{construct_inputs_embeds.1} parent=1 // pred_check
      _
    $region15: #{construct_inputs_embeds.1} parent=1 // pred_check_branch
      %28 = sbr.rel (0) target = $region17
    $region16: #{construct_inputs_embeds.1} parent=1 // pred_region
      _
    $region17: #{construct_inputs_embeds.1} parent=1 // pred_fallthru
      _
    // Predicated region
    $region18: #{construct_inputs_embeds.1} parent=1 // pred_check
      _
    $region19: #{construct_inputs_embeds.1} parent=1 // pred_check_branch
      %30 = sbr.rel (0) target = $region21
    $region20: #{construct_inputs_embeds.1} parent=1 // pred_region
      %31 = dma.done [#allocation3], 1536
    $region21: #{construct_inputs_embeds.1} parent=1 // pred_fallthru
      _
    %v32 = vld [vmem:[%s0] sm:$0xff]
    %v33 = vld [vmem:[%s0 + $0x8] sm:$0xff]
    %v34 = vld [vmem:[%s0 + $0x10] sm:$0xff]
    %v35 = vld [vmem:[%s0 + $0x18] sm:$0xff]
    %v36 = vlaneseq
    %v37 = vand.u32 %v36, 127
    %38 = vset.pattern.permute.xlu0 0
    %39 = vperm.xlu0 %38, %v32
    %v40 = vpop.permute.xlu0 %39
    %41 = vset.pattern.permute.xlu0 0
    %42 = vperm.xlu0 %41, %v33
    %v43 = vpop.permute.xlu0 %42
    %44 = vset.pattern.permute.xlu0 0
    %45 = vperm.xlu0 %44, %v34
    %v46 = vpop.permute.xlu0 %45
    %47 = vset.pattern.permute.xlu0 0
    %48 = vperm.xlu0 %47, %v35
    %v49 = vpop.permute.xlu0 %48
    %vm50 = vcmp.eq.s32.totalorder %v37, %v40
    %vm51 = vcmp.eq.s32.totalorder %v37, %v43
    %vm52 = vcmp.eq.s32.totalorder %v37, %v46
    %vm53 = vcmp.eq.s32.totalorder %v37, %v49
    %v54 = vsel %vm50, 1, 0
    %v55 = vsel %vm51, 1, 0
    %v56 = vsel %vm52, 1, 0
    %v57 = vsel %vm53, 1, 0
    %v58 = vcvt.s32.f32 %v54
    %v59 = vcvt.s32.f32 %v55
    %v60 = vcvt.s32.f32 %v56
    %v61 = vcvt.s32.f32 %v57
    %v62 = vld [vmem:[%s2] sm:$0xf]
    %v63 = vld [vmem:[#allocation2] sm:$0xff]
    %v64 = vld [vmem:[#allocation2 + $0x8] sm:$0xff]
    %v65 = vld [vmem:[#allocation2 + $0x10] sm:$0xff]
    %v66 = vld [vmem:[#allocation2 + $0x18] sm:$0xff]
    %v67 = vld [vmem:[#allocation2 + $0x20] sm:$0xff]
    %v68 = vld [vmem:[#allocation2 + $0x28] sm:$0xff]
    %v69 = vld [vmem:[#allocation2 + $0x30] sm:$0xff]
    %v70 = vld [vmem:[#allocation2 + $0x38] sm:$0xff]
    %v71 = vld [vmem:[#allocation2 + $0x40] sm:$0xff]
    %v72 = vld [vmem:[#allocation2 + $0x48] sm:$0xff]
    %v73 = vld [vmem:[#allocation2 + $0x50] sm:$0xff]
    %v74 = vld [vmem:[#allocation2 + $0x58] sm:$0xff]
    %vm75 = vcmask 785408
    %v77 = vsel %vm75, %v58, 0
    %v80 = vsel %vm75, %v59, 0
    %v83 = vsel %vm75, %v60, 0
    %v86 = vsel %vm75, %v61, 0
    %v89 = vsel %vm75, %v62, 0
    %91 = vmatprep.subr.mxu0 0.0
    %v92 = vand.u32 %v63, 4294901760
    %93 = vmatpush1.msra.mxu0 %v92
    %94 = vmatprep.subr.mxu0 0.0
    %v95 = vand.u32 %v64, 4294901760
    %96 = vmatpush1.msra.mxu0 %v95
    %97 = vmatprep.subr.mxu0 0.0
    %v98 = vand.u32 %v65, 4294901760
    %99 = vmatpush1.msra.mxu0 %v98
    %100 = vmatprep.subr.mxu0 0.0
    %v101 = vand.u32 %v66, 4294901760
    %102 = vmatpush1.msra.mxu0 %v101
    %103 = vmatprep.subr.mxu0 0.0
    %v104 = vand.u32 %v67, 4294901760
    %105 = vmatpush1.msra.mxu0 %v104
    %106 = vmatprep.subr.mxu0 0.0
    %v107 = vand.u32 %v68, 4294901760
    %108 = vmatpush1.msra.mxu0 %v107
    %109 = vmatprep.subr.mxu0 0.0
    %v110 = vand.u32 %v69, 4294901760
    %111 = vmatpush1.msra.mxu0 %v110
    %112 = vmatprep.subr.mxu0 0.0
    %v113 = vand.u32 %v70, 4294901760
    %114 = vmatpush1.msra.mxu0 %v113
    %115 = vmatprep.subr.mxu0 0.0
    %v116 = vand.u32 %v71, 4294901760
    %117 = vmatpush1.msra.mxu0 %v116
    %118 = vmatprep.subr.mxu0 0.0
    %v119 = vand.u32 %v72, 4294901760
    %120 = vmatpush1.msra.mxu0 %v119
    %121 = vmatprep.subr.mxu0 0.0
    %v122 = vand.u32 %v73, 4294901760
    %123 = vmatpush1.msra.mxu0 %v122
    %124 = vmatprep.subr.mxu0 0.0
    %v125 = vand.u32 %v74, 4294901760
    %126 = vmatpush1.msra.mxu0 %v125
    %127 = vmatprep.subr.mxu0 0.0
    %128 = vmatpush1.msra.mxu0 0.0
    %129 = vmatprep.subr.mxu0 0.0
    %130 = vmatpush1.msra.mxu0 0.0
    %131 = vmatprep.subr.mxu0 0.0
    %132 = vmatpush1.msra.mxu0 0.0
    %133 = vmatprep.subr.mxu0 0.0
    %134 = vmatpush1.msra.mxu0 0.0
    %135 = vmatprep.subr.mxu0 0.0
    %136 = vmatpush1.msra.mxu0 0.0
    %137 = vmatprep.subr.mxu0 0.0
    %138 = vmatpush1.msra.mxu0 0.0
    %139 = vmatprep.subr.mxu0 0.0
    %140 = vmatpush1.msra.mxu0 0.0
    %141 = vmatprep.subr.mxu0 0.0
    %142 = vmatpush1.msra.mxu0 0.0
    %143 = vmatprep.subr.mxu0 0.0
    %144 = vmatpush1.msra.mxu0 0.0
    %145 = vmatprep.subr.mxu0 0.0
    %146 = vmatpush1.msra.mxu0 0.0
    %147 = vmatprep.subr.mxu0 0.0
    %148 = vmatpush1.msra.mxu0 0.0
    %149 = vmatprep.subr.mxu0 0.0
    %150 = vmatpush1.msra.mxu0 0.0
    %151 = vmatprep.subr.mxu0 0.0
    %152 = vmatpush1.msra.mxu0 0.0
    %153 = vmatprep.subr.mxu0 0.0
    %154 = vmatpush1.msra.mxu0 0.0
    %155 = vmatprep.subr.mxu0 0.0
    %156 = vmatpush1.msra.mxu0 0.0
    %157 = vmatprep.subr.mxu0 0.0
    %158 = vmatpush1.msra.mxu0 0.0
    %159 = vmatprep.subr.mxu0 0.0
    %160 = vmatpush1.msra.mxu0 0.0
    %161 = vmatprep.subr.mxu0 0.0
    %162 = vmatpush1.msra.mxu0 0.0
    %163 = vmatprep.subr.mxu0 0.0
    %164 = vmatpush1.msra.mxu0 0.0
    %165 = vmatprep.subr.mxu0 0.0
    %166 = vmatpush1.msra.mxu0 0.0
    %167 = vmatprep.mubr.f32.mxu0 0.0
    %v168 = vand.u32 %v77, 4294901760
    %v169 = vsub.f32 %v77, %v168
    %v170 = vand.u32 %v169, 4294901760
    %v171 = vsub.f32 %v169, %v170
    %v172 = vand.u32 %v171, 4294901760
    %173 = vmatmul.mubr.f32.gmra.mrb[0].mxu0 %v172
    %v174 = vpop.f32.mrb[0].mxu0
    %v175 = vadd.f32 0.0, %v174
    %v176 = vpop.f32.mrb[0].mxu0
    %177 = vmatprep.mubr.f32.mxu0 0.0
    %v178 = vand.u32 %v80, 4294901760
    %v179 = vsub.f32 %v80, %v178
    %v180 = vand.u32 %v179, 4294901760
    %v181 = vsub.f32 %v179, %v180
    %v182 = vand.u32 %v181, 4294901760
    %183 = vmatmul.mubr.f32.gmra.mrb[0].mxu0 %v182
    %v184 = vpop.f32.mrb[0].mxu0
    %v185 = vadd.f32 0.0, %v184
    %v186 = vpop.f32.mrb[0].mxu0
    %187 = vmatprep.mubr.f32.mxu0 0.0
    %v188 = vand.u32 %v83, 4294901760
    %v189 = vsub.f32 %v83, %v188
    %v190 = vand.u32 %v189, 4294901760
    %v191 = vsub.f32 %v189, %v190
    %v192 = vand.u32 %v191, 4294901760
    %193 = vmatmul.mubr.f32.gmra.mrb[0].mxu0 %v192
    %v194 = vpop.f32.mrb[0].mxu0
    %v195 = vadd.f32 0.0, %v194
    %v196 = vpop.f32.mrb[0].mxu0
    %197 = vmatprep.mubr.f32.mxu0 0.0
    %v198 = vand.u32 %v86, 4294901760
    %v199 = vsub.f32 %v86, %v198
    %v200 = vand.u32 %v199, 4294901760
    %v201 = vsub.f32 %v199, %v200
    %v202 = vand.u32 %v201, 4294901760
    %203 = vmatmul.mubr.f32.gmra.mrb[0].mxu0 %v202
    %v204 = vpop.f32.mrb[0].mxu0
    %v205 = vadd.f32 0.0, %v204
    %v206 = vpop.f32.mrb[0].mxu0
    %207 = vmatprep.mubr.f32.mxu0 0.0
    %v208 = vand.u32 %v89, 4294901760
    %v209 = vsub.f32 %v89, %v208
    %v210 = vand.u32 %v209, 4294901760
    %v211 = vsub.f32 %v209, %v210
    %v212 = vand.u32 %v211, 4294901760
    %213 = vmatmul.mubr.f32.gmra.mrb[0].mxu0 %v212
    %v214 = vpop.f32.mrb[0].mxu0
    %v215 = vadd.f32 0.0, %v214
    %v216 = vpop.f32.mrb[0].mxu0
    %217 = vdwg.mxu0
    %218 = vmatprep.subr.mxu0 0.0
    %v219 = vand.u32 %v63, 4294901760
    %v220 = vsub.f32 %v63, %v219
    %v221 = vand.u32 %v220, 4294901760
    %v222 = vsub.f32 %v220, %v221
    %v223 = vand.u32 %v222, 4294901760
    %224 = vmatpush1.msra.mxu0 %v223
    %225 = vmatprep.subr.mxu0 0.0
    %v226 = vand.u32 %v64, 4294901760
    %v227 = vsub.f32 %v64, %v226
    %v228 = vand.u32 %v227, 4294901760
    %v229 = vsub.f32 %v227, %v228
    %v230 = vand.u32 %v229, 4294901760
    %231 = vmatpush1.msra.mxu0 %v230
    %232 = vmatprep.subr.mxu0 0.0
    %v233 = vand.u32 %v65, 4294901760
    %v234 = vsub.f32 %v65, %v233
    %v235 = vand.u32 %v234, 4294901760
    %v236 = vsub.f32 %v234, %v235
    %v237 = vand.u32 %v236, 4294901760
    %238 = vmatpush1.msra.mxu0 %v237
    %239 = vmatprep.subr.mxu0 0.0
    %v240 = vand.u32 %v66, 4294901760
    %v241 = vsub.f32 %v66, %v240
    %v242 = vand.u32 %v241, 4294901760
    %v243 = vsub.f32 %v241, %v242
    %v244 = vand.u32 %v243, 4294901760
    %245 = vmatpush1.msra.mxu0 %v244
    %246 = vmatprep.subr.mxu0 0.0
    %v247 = vand.u32 %v67, 4294901760
    %v248 = vsub.f32 %v67, %v247
    %v249 = vand.u32 %v248, 4294901760
    %v250 = vsub.f32 %v248, %v249
    %v251 = vand.u32 %v250, 4294901760
    %252 = vmatpush1.msra.mxu0 %v251
    %253 = vmatprep.subr.mxu0 0.0
    %v254 = vand.u32 %v68, 4294901760
    %v255 = vsub.f32 %v68, %v254
    %v256 = vand.u32 %v255, 4294901760
    %v257 = vsub.f32 %v255, %v256
    %v258 = vand.u32 %v257, 4294901760
    %259 = vmatpush1.msra.mxu0 %v258
    %260 = vmatprep.subr.mxu0 0.0
    %v261 = vand.u32 %v69, 4294901760
    %v262 = vsub.f32 %v69, %v261
    %v263 = vand.u32 %v262, 4294901760
    %v264 = vsub.f32 %v262, %v263
    %v265 = vand.u32 %v264, 4294901760
    %266 = vmatpush1.msra.mxu0 %v265
    %267 = vmatprep.subr.mxu0 0.0
    %v268 = vand.u32 %v70, 4294901760
    %v269 = vsub.f32 %v70, %v268
    %v270 = vand.u32 %v269, 4294901760
    %v271 = vsub.f32 %v269, %v270
    %v272 = vand.u32 %v271, 4294901760
    %273 = vmatpush1.msra.mxu0 %v272
    %274 = vmatprep.subr.mxu0 0.0
    %v275 = vand.u32 %v71, 4294901760
    %v276 = vsub.f32 %v71, %v275
    %v277 = vand.u32 %v276, 4294901760
    %v278 = vsub.f32 %v276, %v277
    %v279 = vand.u32 %v278, 4294901760
    %280 = vmatpush1.msra.mxu0 %v279
    %281 = vmatprep.subr.mxu0 0.0
    %v282 = vand.u32 %v72, 4294901760
    %v283 = vsub.f32 %v72, %v282
    %v284 = vand.u32 %v283, 4294901760
    %v285 = vsub.f32 %v283, %v284
    %v286 = vand.u32 %v285, 4294901760
    %287 = vmatpush1.msra.mxu0 %v286
    %288 = vmatprep.subr.mxu0 0.0
    %v289 = vand.u32 %v73, 4294901760
    %v290 = vsub.f32 %v73, %v289
    %v291 = vand.u32 %v290, 4294901760
    %v292 = vsub.f32 %v290, %v291
    %v293 = vand.u32 %v292, 4294901760
    %294 = vmatpush1.msra.mxu0 %v293
    %295 = vmatprep.subr.mxu0 0.0
    %v296 = vand.u32 %v74, 4294901760
    %v297 = vsub.f32 %v74, %v296
    %v298 = vand.u32 %v297, 4294901760
    %v299 = vsub.f32 %v297, %v298
    %v300 = vand.u32 %v299, 4294901760
    %301 = vmatpush1.msra.mxu0 %v300
    %302 = vmatprep.subr.mxu0 0.0
    %303 = vmatpush1.msra.mxu0 0.0
    %304 = vmatprep.subr.mxu0 0.0
    %305 = vmatpush1.msra.mxu0 0.0
    %306 = vmatprep.subr.mxu0 0.0
    %307 = vmatpush1.msra.mxu0 0.0
    %308 = vmatprep.subr.mxu0 0.0
    %309 = vmatpush1.msra.mxu0 0.0
    %310 = vmatprep.subr.mxu0 0.0
    %311 = vmatpush1.msra.mxu0 0.0
    %312 = vmatprep.subr.mxu0 0.0
    %313 = vmatpush1.msra.mxu0 0.0
    %314 = vmatprep.subr.mxu0 0.0
    %315 = vmatpush1.msra.mxu0 0.0
    %316 = vmatprep.subr.mxu0 0.0
    %317 = vmatpush1.msra.mxu0 0.0
    %318 = vmatprep.subr.mxu0 0.0
    %319 = vmatpush1.msra.mxu0 0.0
    %320 = vmatprep.subr.mxu0 0.0
    %321 = vmatpush1.msra.mxu0 0.0
    %322 = vmatprep.subr.mxu0 0.0
    %323 = vmatpush1.msra.mxu0 0.0
    %324 = vmatprep.subr.mxu0 0.0
    %325 = vmatpush1.msra.mxu0 0.0
    %326 = vmatprep.subr.mxu0 0.0
    %327 = vmatpush1.msra.mxu0 0.0
    %328 = vmatprep.subr.mxu0 0.0
    %329 = vmatpush1.msra.mxu0 0.0
    %330 = vmatprep.subr.mxu0 0.0
    %331 = vmatpush1.msra.mxu0 0.0
    %332 = vmatprep.subr.mxu0 0.0
    %333 = vmatpush1.msra.mxu0 0.0
    %334 = vmatprep.subr.mxu0 0.0
    %335 = vmatpush1.msra.mxu0 0.0
    %336 = vmatprep.subr.mxu0 0.0
    %337 = vmatpush1.msra.mxu0 0.0
    %338 = vmatprep.subr.mxu0 0.0
    %339 = vmatpush1.msra.mxu0 0.0
    %340 = vmatprep.subr.mxu0 0.0
    %341 = vmatpush1.msra.mxu0 0.0
    %342 = vmatprep.mubr.f32.mxu0 0.0
    %v343 = vand.u32 %v77, 4294901760
    %344 = vmatmul.mubr.f32.gmra.mrb[0].mxu0 %v343
    %v345 = vpop.f32.mrb[0].mxu0
    %v346 = vadd.f32 %v175, %v345
    %v347 = vpop.f32.mrb[0].mxu0
    %348 = vmatprep.mubr.f32.mxu0 0.0
    %v349 = vand.u32 %v80, 4294901760
    %350 = vmatmul.mubr.f32.gmra.mrb[0].mxu0 %v349
    %v351 = vpop.f32.mrb[0].mxu0
    %v352 = vadd.f32 %v185, %v351
    %v353 = vpop.f32.mrb[0].mxu0
    %354 = vmatprep.mubr.f32.mxu0 0.0
    %v355 = vand.u32 %v83, 4294901760
    %356 = vmatmul.mubr.f32.gmra.mrb[0].mxu0 %v355
    %v357 = vpop.f32.mrb[0].mxu0
    %v358 = vadd.f32 %v195, %v357
    %v359 = vpop.f32.mrb[0].mxu0
    %360 = vmatprep.mubr.f32.mxu0 0.0
    %v361 = vand.u32 %v86, 4294901760
    %362 = vmatmul.mubr.f32.gmra.mrb[0].mxu0 %v361
    %v363 = vpop.f32.mrb[0].mxu0
    %v364 = vadd.f32 %v205, %v363
    %v365 = vpop.f32.mrb[0].mxu0
    %366 = vmatprep.mubr.f32.mxu0 0.0
    %v367 = vand.u32 %v89, 4294901760
    %368 = vmatmul.mubr.f32.gmra.mrb[0].mxu0 %v367
    %v369 = vpop.f32.mrb[0].mxu0
    %v370 = vadd.f32 %v215, %v369
    %v371 = vpop.f32.mrb[0].mxu0
    %372 = vdwg.mxu0
    %373 = vmatprep.subr.mxu0 0.0
    %v374 = vand.u32 %v63, 4294901760
    %v375 = vsub.f32 %v63, %v374
    %376 = vmatpush1.msra.mxu0 %v375
    %377 = vmatprep.subr.mxu0 0.0
    %v378 = vand.u32 %v64, 4294901760
    %v379 = vsub.f32 %v64, %v378
    %380 = vmatpush1.msra.mxu0 %v379
    %381 = vmatprep.subr.mxu0 0.0
    %v382 = vand.u32 %v65, 4294901760
    %v383 = vsub.f32 %v65, %v382
    %384 = vmatpush1.msra.mxu0 %v383
    %385 = vmatprep.subr.mxu0 0.0
    %v386 = vand.u32 %v66, 4294901760
    %v387 = vsub.f32 %v66, %v386
    %388 = vmatpush1.msra.mxu0 %v387
    %389 = vmatprep.subr.mxu0 0.0
    %v390 = vand.u32 %v67, 4294901760
    %v391 = vsub.f32 %v67, %v390
    %392 = vmatpush1.msra.mxu0 %v391
    %393 = vmatprep.subr.mxu0 0.0
    %v394 = vand.u32 %v68, 4294901760
    %v395 = vsub.f32 %v68, %v394
    %396 = vmatpush1.msra.mxu0 %v395
    %397 = vmatprep.subr.mxu0 0.0
    %v398 = vand.u32 %v69, 4294901760
    %v399 = vsub.f32 %v69, %v398
    %400 = vmatpush1.msra.mxu0 %v399
    %401 = vmatprep.subr.mxu0 0.0
    %v402 = vand.u32 %v70, 4294901760
    %v403 = vsub.f32 %v70, %v402
    %404 = vmatpush1.msra.mxu0 %v403
    %405 = vmatprep.subr.mxu0 0.0
    %v406 = vand.u32 %v71, 4294901760
    %v407 = vsub.f32 %v71, %v406
    %408 = vmatpush1.msra.mxu0 %v407
    %409 = vmatprep.subr.mxu0 0.0
    %v410 = vand.u32 %v72, 4294901760
    %v411 = vsub.f32 %v72, %v410
    %412 = vmatpush1.msra.mxu0 %v411
    %413 = vmatprep.subr.mxu0 0.0
    %v414 = vand.u32 %v73, 4294901760
    %v415 = vsub.f32 %v73, %v414
    %416 = vmatpush1.msra.mxu0 %v415
    %417 = vmatprep.subr.mxu0 0.0
    %v418 = vand.u32 %v74, 4294901760
    %v419 = vsub.f32 %v74, %v418
    %420 = vmatpush1.msra.mxu0 %v419
    %421 = vmatprep.subr.mxu0 0.0
    %422 = vmatpush1.msra.mxu0 0.0
    %423 = vmatprep.subr.mxu0 0.0
    %424 = vmatpush1.msra.mxu0 0.0
    %425 = vmatprep.subr.mxu0 0.0
    %426 = vmatpush1.msra.mxu0 0.0
    %427 = vmatprep.subr.mxu0 0.0
    %428 = vmatpush1.msra.mxu0 0.0
    %429 = vmatprep.subr.mxu0 0.0
    %430 = vmatpush1.msra.mxu0 0.0
    %431 = vmatprep.subr.mxu0 0.0
    %432 = vmatpush1.msra.mxu0 0.0
    %433 = vmatprep.subr.mxu0 0.0
    %434 = vmatpush1.msra.mxu0 0.0
    %435 = vmatprep.subr.mxu0 0.0
    %436 = vmatpush1.msra.mxu0 0.0
    %437 = vmatprep.subr.mxu0 0.0
    %438 = vmatpush1.msra.mxu0 0.0
    %439 = vmatprep.subr.mxu0 0.0
    %440 = vmatpush1.msra.mxu0 0.0
    %441 = vmatprep.subr.mxu0 0.0
    %442 = vmatpush1.msra.mxu0 0.0
    %443 = vmatprep.subr.mxu0 0.0
    %444 = vmatpush1.msra.mxu0 0.0
    %445 = vmatprep.subr.mxu0 0.0
    %446 = vmatpush1.msra.mxu0 0.0
    %447 = vmatprep.subr.mxu0 0.0
    %448 = vmatpush1.msra.mxu0 0.0
    %449 = vmatprep.subr.mxu0 0.0
    %450 = vmatpush1.msra.mxu0 0.0
    %451 = vmatprep.subr.mxu0 0.0
    %452 = vmatpush1.msra.mxu0 0.0
    %453 = vmatprep.subr.mxu0 0.0
    %454 = vmatpush1.msra.mxu0 0.0
    %455 = vmatprep.subr.mxu0 0.0
    %456 = vmatpush1.msra.mxu0 0.0
    %457 = vmatprep.subr.mxu0 0.0
    %458 = vmatpush1.msra.mxu0 0.0
    %459 = vmatprep.subr.mxu0 0.0
    %460 = vmatpush1.msra.mxu0 0.0
    %461 = vmatprep.mubr.f32.mxu0 0.0
    %v462 = vand.u32 %v77, 4294901760
    %v463 = vsub.f32 %v77, %v462
    %464 = vmatmul.mubr.f32.gmra.mrb[0].mxu0 %v463
    %v465 = vpop.f32.mrb[0].mxu0
    %v466 = vadd.f32 %v346, %v465
    %v467 = vpop.f32.mrb[0].mxu0
    %468 = vmatprep.mubr.f32.mxu0 0.0
    %v469 = vand.u32 %v80, 4294901760
    %v470 = vsub.f32 %v80, %v469
    %471 = vmatmul.mubr.f32.gmra.mrb[0].mxu0 %v470
    %v472 = vpop.f32.mrb[0].mxu0
    %v473 = vadd.f32 %v352, %v472
    %v474 = vpop.f32.mrb[0].mxu0
    %475 = vmatprep.mubr.f32.mxu0 0.0
    %v476 = vand.u32 %v83, 4294901760
    %v477 = vsub.f32 %v83, %v476
    %478 = vmatmul.mubr.f32.gmra.mrb[0].mxu0 %v477
    %v479 = vpop.f32.mrb[0].mxu0
    %v480 = vadd.f32 %v358, %v479
    %v481 = vpop.f32.mrb[0].mxu0
    %482 = vmatprep.mubr.f32.mxu0 0.0
    %v483 = vand.u32 %v86, 4294901760
    %v484 = vsub.f32 %v86, %v483
    %485 = vmatmul.mubr.f32.gmra.mrb[0].mxu0 %v484
    %v486 = vpop.f32.mrb[0].mxu0
    %v487 = vadd.f32 %v364, %v486
    %v488 = vpop.f32.mrb[0].mxu0
    %489 = vmatprep.mubr.f32.mxu0 0.0
    %v490 = vand.u32 %v89, 4294901760
    %v491 = vsub.f32 %v89, %v490
    %492 = vmatmul.mubr.f32.gmra.mrb[0].mxu0 %v491
    %v493 = vpop.f32.mrb[0].mxu0
    %v494 = vadd.f32 %v370, %v493
    %v495 = vpop.f32.mrb[0].mxu0
    %496 = vdwg.mxu0
    %497 = vmatprep.subr.mxu0 0.0
    %v498 = vand.u32 %v63, 4294901760
    %499 = vmatpush1.msra.mxu0 %v498
    %500 = vmatprep.subr.mxu0 0.0
    %v501 = vand.u32 %v64, 4294901760
    %502 = vmatpush1.msra.mxu0 %v501
    %503 = vmatprep.subr.mxu0 0.0
    %v504 = vand.u32 %v65, 4294901760
    %505 = vmatpush1.msra.mxu0 %v504
    %506 = vmatprep.subr.mxu0 0.0
    %v507 = vand.u32 %v66, 4294901760
    %508 = vmatpush1.msra.mxu0 %v507
    %509 = vmatprep.subr.mxu0 0.0
    %v510 = vand.u32 %v67, 4294901760
    %511 = vmatpush1.msra.mxu0 %v510
    %512 = vmatprep.subr.mxu0 0.0
    %v513 = vand.u32 %v68, 4294901760
    %514 = vmatpush1.msra.mxu0 %v513
    %515 = vmatprep.subr.mxu0 0.0
    %v516 = vand.u32 %v69, 4294901760
    %517 = vmatpush1.msra.mxu0 %v516
    %518 = vmatprep.subr.mxu0 0.0
    %v519 = vand.u32 %v70, 4294901760
    %520 = vmatpush1.msra.mxu0 %v519
    %521 = vmatprep.subr.mxu0 0.0
    %v522 = vand.u32 %v71, 4294901760
    %523 = vmatpush1.msra.mxu0 %v522
    %524 = vmatprep.subr.mxu0 0.0
    %v525 = vand.u32 %v72, 4294901760
    %526 = vmatpush1.msra.mxu0 %v525
    %527 = vmatprep.subr.mxu0 0.0
    %v528 = vand.u32 %v73, 4294901760
    %529 = vmatpush1.msra.mxu0 %v528
    %530 = vmatprep.subr.mxu0 0.0
    %v531 = vand.u32 %v74, 4294901760
    %532 = vmatpush1.msra.mxu0 %v531
    %533 = vmatprep.subr.mxu0 0.0
    %534 = vmatpush1.msra.mxu0 0.0
    %535 = vmatprep.subr.mxu0 0.0
    %536 = vmatpush1.msra.mxu0 0.0
    %537 = vmatprep.subr.mxu0 0.0
    %538 = vmatpush1.msra.mxu0 0.0
    %539 = vmatprep.subr.mxu0 0.0
    %540 = vmatpush1.msra.mxu0 0.0
    %541 = vmatprep.subr.mxu0 0.0
    %542 = vmatpush1.msra.mxu0 0.0
    %543 = vmatprep.subr.mxu0 0.0
    %544 = vmatpush1.msra.mxu0 0.0
    %545 = vmatprep.subr.mxu0 0.0
    %546 = vmatpush1.msra.mxu0 0.0
    %547 = vmatprep.subr.mxu0 0.0
    %548 = vmatpush1.msra.mxu0 0.0
    %549 = vmatprep.subr.mxu0 0.0
    %550 = vmatpush1.msra.mxu0 0.0
    %551 = vmatprep.subr.mxu0 0.0
    %552 = vmatpush1.msra.mxu0 0.0
    %553 = vmatprep.subr.mxu0 0.0
    %554 = vmatpush1.msra.mxu0 0.0
    %555 = vmatprep.subr.mxu0 0.0
    %556 = vmatpush1.msra.mxu0 0.0
    %557 = vmatprep.subr.mxu0 0.0
    %558 = vmatpush1.msra.mxu0 0.0
    %559 = vmatprep.subr.mxu0 0.0
    %560 = vmatpush1.msra.mxu0 0.0
    %561 = vmatprep.subr.mxu0 0.0
    %562 = vmatpush1.msra.mxu0 0.0
    %563 = vmatprep.subr.mxu0 0.0
    %564 = vmatpush1.msra.mxu0 0.0
    %565 = vmatprep.subr.mxu0 0.0
    %566 = vmatpush1.msra.mxu0 0.0
    %567 = vmatprep.subr.mxu0 0.0
    %568 = vmatpush1.msra.mxu0 0.0
    %569 = vmatprep.subr.mxu0 0.0
    %570 = vmatpush1.msra.mxu0 0.0
    %571 = vmatprep.subr.mxu0 0.0
    %572 = vmatpush1.msra.mxu0 0.0
    %573 = vmatprep.mubr.f32.mxu0 0.0
    %v574 = vand.u32 %v77, 4294901760
    %v575 = vsub.f32 %v77, %v574
    %v576 = vand.u32 %v575, 4294901760
    %577 = vmatmul.mubr.f32.gmra.mrb[0].mxu0 %v576
    %v578 = vpop.f32.mrb[0].mxu0
    %v579 = vadd.f32 %v466, %v578
    %v580 = vpop.f32.mrb[0].mxu0
    %581 = vmatprep.mubr.f32.mxu0 0.0
    %v582 = vand.u32 %v80, 4294901760
    %v583 = vsub.f32 %v80, %v582
    %v584 = vand.u32 %v583, 4294901760
    %585 = vmatmul.mubr.f32.gmra.mrb[0].mxu0 %v584
    %v586 = vpop.f32.mrb[0].mxu0
    %v587 = vadd.f32 %v473, %v586
    %v588 = vpop.f32.mrb[0].mxu0
    %589 = vmatprep.mubr.f32.mxu0 0.0
    %v590 = vand.u32 %v83, 4294901760
    %v591 = vsub.f32 %v83, %v590
    %v592 = vand.u32 %v591, 4294901760
    %593 = vmatmul.mubr.f32.gmra.mrb[0].mxu0 %v592
    %v594 = vpop.f32.mrb[0].mxu0
    %v595 = vadd.f32 %v480, %v594
    %v596 = vpop.f32.mrb[0].mxu0
    %597 = vmatprep.mubr.f32.mxu0 0.0
    %v598 = vand.u32 %v86, 4294901760
    %v599 = vsub.f32 %v86, %v598
    %v600 = vand.u32 %v599, 4294901760
    %601 = vmatmul.mubr.f32.gmra.mrb[0].mxu0 %v600
    %v602 = vpop.f32.mrb[0].mxu0
    %v603 = vadd.f32 %v487, %v602
    %v604 = vpop.f32.mrb[0].mxu0
    %605 = vmatprep.mubr.f32.mxu0 0.0
    %v606 = vand.u32 %v89, 4294901760
    %v607 = vsub.f32 %v89, %v606
    %v608 = vand.u32 %v607, 4294901760
    %609 = vmatmul.mubr.f32.gmra.mrb[0].mxu0 %v608
    %v610 = vpop.f32.mrb[0].mxu0
    %v611 = vadd.f32 %v494, %v610
    %v612 = vpop.f32.mrb[0].mxu0
    %613 = vdwg.mxu0
    %614 = vmatprep.subr.mxu0 0.0
    %v615 = vand.u32 %v63, 4294901760
    %v616 = vsub.f32 %v63, %v615
    %v617 = vand.u32 %v616, 4294901760
    %618 = vmatpush1.msra.mxu0 %v617
    %619 = vmatprep.subr.mxu0 0.0
    %v620 = vand.u32 %v64, 4294901760
    %v621 = vsub.f32 %v64, %v620
    %v622 = vand.u32 %v621, 4294901760
    %623 = vmatpush1.msra.mxu0 %v622
    %624 = vmatprep.subr.mxu0 0.0
    %v625 = vand.u32 %v65, 4294901760
    %v626 = vsub.f32 %v65, %v625
    %v627 = vand.u32 %v626, 4294901760
    %628 = vmatpush1.msra.mxu0 %v627
    %629 = vmatprep.subr.mxu0 0.0
    %v630 = vand.u32 %v66, 4294901760
    %v631 = vsub.f32 %v66, %v630
    %v632 = vand.u32 %v631, 4294901760
    %633 = vmatpush1.msra.mxu0 %v632
    %634 = vmatprep.subr.mxu0 0.0
    %v635 = vand.u32 %v67, 4294901760
    %v636 = vsub.f32 %v67, %v635
    %v637 = vand.u32 %v636, 4294901760
    %638 = vmatpush1.msra.mxu0 %v637
    %639 = vmatprep.subr.mxu0 0.0
    %v640 = vand.u32 %v68, 4294901760
    %v641 = vsub.f32 %v68, %v640
    %v642 = vand.u32 %v641, 4294901760
    %643 = vmatpush1.msra.mxu0 %v642
    %644 = vmatprep.subr.mxu0 0.0
    %v645 = vand.u32 %v69, 4294901760
    %v646 = vsub.f32 %v69, %v645
    %v647 = vand.u32 %v646, 4294901760
    %648 = vmatpush1.msra.mxu0 %v647
    %649 = vmatprep.subr.mxu0 0.0
    %v650 = vand.u32 %v70, 4294901760
    %v651 = vsub.f32 %v70, %v650
    %v652 = vand.u32 %v651, 4294901760
    %653 = vmatpush1.msra.mxu0 %v652
    %654 = vmatprep.subr.mxu0 0.0
    %v655 = vand.u32 %v71, 4294901760
    %v656 = vsub.f32 %v71, %v655
    %v657 = vand.u32 %v656, 4294901760
    %658 = vmatpush1.msra.mxu0 %v657
    %659 = vmatprep.subr.mxu0 0.0
    %v660 = vand.u32 %v72, 4294901760
    %v661 = vsub.f32 %v72, %v660
    %v662 = vand.u32 %v661, 4294901760
    %663 = vmatpush1.msra.mxu0 %v662
    %664 = vmatprep.subr.mxu0 0.0
    %v665 = vand.u32 %v73, 4294901760
    %v666 = vsub.f32 %v73, %v665
    %v667 = vand.u32 %v666, 4294901760
    %668 = vmatpush1.msra.mxu0 %v667
    %669 = vmatprep.subr.mxu0 0.0
    %v670 = vand.u32 %v74, 4294901760
    %v671 = vsub.f32 %v74, %v670
    %v672 = vand.u32 %v671, 4294901760
    %673 = vmatpush1.msra.mxu0 %v672
    %674 = vmatprep.subr.mxu0 0.0
    %675 = vmatpush1.msra.mxu0 0.0
    %676 = vmatprep.subr.mxu0 0.0
    %677 = vmatpush1.msra.mxu0 0.0
    %678 = vmatprep.subr.mxu0 0.0
    %679 = vmatpush1.msra.mxu0 0.0
    %680 = vmatprep.subr.mxu0 0.0
    %681 = vmatpush1.msra.mxu0 0.0
    %682 = vmatprep.subr.mxu0 0.0
    %683 = vmatpush1.msra.mxu0 0.0
    %684 = vmatprep.subr.mxu0 0.0
    %685 = vmatpush1.msra.mxu0 0.0
    %686 = vmatprep.subr.mxu0 0.0
    %687 = vmatpush1.msra.mxu0 0.0
    %688 = vmatprep.subr.mxu0 0.0
    %689 = vmatpush1.msra.mxu0 0.0
    %690 = vmatprep.subr.mxu0 0.0
    %691 = vmatpush1.msra.mxu0 0.0
    %692 = vmatprep.subr.mxu0 0.0
    %693 = vmatpush1.msra.mxu0 0.0
    %694 = vmatprep.subr.mxu0 0.0
    %695 = vmatpush1.msra.mxu0 0.0
    %696 = vmatprep.subr.mxu0 0.0
    %697 = vmatpush1.msra.mxu0 0.0
    %698 = vmatprep.subr.mxu0 0.0
    %699 = vmatpush1.msra.mxu0 0.0
    %700 = vmatprep.subr.mxu0 0.0
    %701 = vmatpush1.msra.mxu0 0.0
    %702 = vmatprep.subr.mxu0 0.0
    %703 = vmatpush1.msra.mxu0 0.0
    %704 = vmatprep.subr.mxu0 0.0
    %705 = vmatpush1.msra.mxu0 0.0
    %706 = vmatprep.subr.mxu0 0.0
    %707 = vmatpush1.msra.mxu0 0.0
    %708 = vmatprep.subr.mxu0 0.0
    %709 = vmatpush1.msra.mxu0 0.0
    %710 = vmatprep.subr.mxu0 0.0
    %711 = vmatpush1.msra.mxu0 0.0
    %712 = vmatprep.subr.mxu0 0.0
    %713 = vmatpush1.msra.mxu0 0.0
    %714 = vmatprep.mubr.f32.mxu0 0.0
    %v715 = vand.u32 %v77, 4294901760
    %716 = vmatmul.mubr.f32.gmra.mrb[0].mxu0 %v715
    %v717 = vpop.f32.mrb[0].mxu0
    %v718 = vadd.f32 %v579, %v717
    %v719 = vpop.f32.mrb[0].mxu0
    %720 = vmatprep.mubr.f32.mxu0 0.0
    %v721 = vand.u32 %v80, 4294901760
    %722 = vmatmul.mubr.f32.gmra.mrb[0].mxu0 %v721
    %v723 = vpop.f32.mrb[0].mxu0
    %v724 = vadd.f32 %v587, %v723
    %v725 = vpop.f32.mrb[0].mxu0
    %726 = vmatprep.mubr.f32.mxu0 0.0
    %v727 = vand.u32 %v83, 4294901760
    %728 = vmatmul.mubr.f32.gmra.mrb[0].mxu0 %v727
    %v729 = vpop.f32.mrb[0].mxu0
    %v730 = vadd.f32 %v595, %v729
    %v731 = vpop.f32.mrb[0].mxu0
    %732 = vmatprep.mubr.f32.mxu0 0.0
    %v733 = vand.u32 %v86, 4294901760
    %734 = vmatmul.mubr.f32.gmra.mrb[0].mxu0 %v733
    %v735 = vpop.f32.mrb[0].mxu0
    %v736 = vadd.f32 %v603, %v735
    %v737 = vpop.f32.mrb[0].mxu0
    %738 = vmatprep.mubr.f32.mxu0 0.0
    %v739 = vand.u32 %v89, 4294901760
    %740 = vmatmul.mubr.f32.gmra.mrb[0].mxu0 %v739
    %v741 = vpop.f32.mrb[0].mxu0
    %v742 = vadd.f32 %v611, %v741
    %v743 = vpop.f32.mrb[0].mxu0
    %744 = vdwg.mxu0
    %745 = vmatprep.subr.mxu0 0.0
    %v746 = vand.u32 %v63, 4294901760
    %747 = vmatpush1.msra.mxu0 %v746
    %748 = vmatprep.subr.mxu0 0.0
    %v749 = vand.u32 %v64, 4294901760
    %750 = vmatpush1.msra.mxu0 %v749
    %751 = vmatprep.subr.mxu0 0.0
    %v752 = vand.u32 %v65, 4294901760
    %753 = vmatpush1.msra.mxu0 %v752
    %754 = vmatprep.subr.mxu0 0.0
    %v755 = vand.u32 %v66, 4294901760
    %756 = vmatpush1.msra.mxu0 %v755
    %757 = vmatprep.subr.mxu0 0.0
    %v758 = vand.u32 %v67, 4294901760
    %759 = vmatpush1.msra.mxu0 %v758
    %760 = vmatprep.subr.mxu0 0.0
    %v761 = vand.u32 %v68, 4294901760
    %762 = vmatpush1.msra.mxu0 %v761
    %763 = vmatprep.subr.mxu0 0.0
    %v764 = vand.u32 %v69, 4294901760
    %765 = vmatpush1.msra.mxu0 %v764
    %766 = vmatprep.subr.mxu0 0.0
    %v767 = vand.u32 %v70, 4294901760
    %768 = vmatpush1.msra.mxu0 %v767
    %769 = vmatprep.subr.mxu0 0.0
    %v770 = vand.u32 %v71, 4294901760
    %771 = vmatpush1.msra.mxu0 %v770
    %772 = vmatprep.subr.mxu0 0.0
    %v773 = vand.u32 %v72, 4294901760
    %774 = vmatpush1.msra.mxu0 %v773
    %775 = vmatprep.subr.mxu0 0.0
    %v776 = vand.u32 %v73, 4294901760
    %777 = vmatpush1.msra.mxu0 %v776
    %778 = vmatprep.subr.mxu0 0.0
    %v779 = vand.u32 %v74, 4294901760
    %780 = vmatpush1.msra.mxu0 %v779
    %781 = vmatprep.subr.mxu0 0.0
    %782 = vmatpush1.msra.mxu0 0.0
    %783 = vmatprep.subr.mxu0 0.0
    %784 = vmatpush1.msra.mxu0 0.0
    %785 = vmatprep.subr.mxu0 0.0
    %786 = vmatpush1.msra.mxu0 0.0
    %787 = vmatprep.subr.mxu0 0.0
    %788 = vmatpush1.msra.mxu0 0.0
    %789 = vmatprep.subr.mxu0 0.0
    %790 = vmatpush1.msra.mxu0 0.0
    %791 = vmatprep.subr.mxu0 0.0
    %792 = vmatpush1.msra.mxu0 0.0
    %793 = vmatprep.subr.mxu0 0.0
    %794 = vmatpush1.msra.mxu0 0.0
    %795 = vmatprep.subr.mxu0 0.0
    %796 = vmatpush1.msra.mxu0 0.0
    %797 = vmatprep.subr.mxu0 0.0
    %798 = vmatpush1.msra.mxu0 0.0
    %799 = vmatprep.subr.mxu0 0.0
    %800 = vmatpush1.msra.mxu0 0.0
    %801 = vmatprep.subr.mxu0 0.0
    %802 = vmatpush1.msra.mxu0 0.0
    %803 = vmatprep.subr.mxu0 0.0
    %804 = vmatpush1.msra.mxu0 0.0
    %805 = vmatprep.subr.mxu0 0.0
    %806 = vmatpush1.msra.mxu0 0.0
    %807 = vmatprep.subr.mxu0 0.0
    %808 = vmatpush1.msra.mxu0 0.0
    %809 = vmatprep.subr.mxu0 0.0
    %810 = vmatpush1.msra.mxu0 0.0
    %811 = vmatprep.subr.mxu0 0.0
    %812 = vmatpush1.msra.mxu0 0.0
    %813 = vmatprep.subr.mxu0 0.0
    %814 = vmatpush1.msra.mxu0 0.0
    %815 = vmatprep.subr.mxu0 0.0
    %816 = vmatpush1.msra.mxu0 0.0
    %817 = vmatprep.subr.mxu0 0.0
    %818 = vmatpush1.msra.mxu0 0.0
    %819 = vmatprep.subr.mxu0 0.0
    %820 = vmatpush1.msra.mxu0 0.0
    %821 = vmatprep.mubr.f32.mxu0 0.0
    %v822 = vand.u32 %v77, 4294901760
    %823 = vmatmul.mubr.f32.gmra.mrb[0].mxu0 %v822
    %v824 = vpop.f32.mrb[0].mxu0
    %v825 = vadd.f32 %v718, %v824
    %v826 = vpop.f32.mrb[0].mxu0
    %827 = vmatprep.mubr.f32.mxu0 0.0
    %v828 = vand.u32 %v80, 4294901760
    %829 = vmatmul.mubr.f32.gmra.mrb[0].mxu0 %v828
    %v830 = vpop.f32.mrb[0].mxu0
    %v831 = vadd.f32 %v724, %v830
    %v832 = vpop.f32.mrb[0].mxu0
    %833 = vmatprep.mubr.f32.mxu0 0.0
    %v834 = vand.u32 %v83, 4294901760
    %835 = vmatmul.mubr.f32.gmra.mrb[0].mxu0 %v834
    %v836 = vpop.f32.mrb[0].mxu0
    %v837 = vadd.f32 %v730, %v836
    %v838 = vpop.f32.mrb[0].mxu0
    %839 = vmatprep.mubr.f32.mxu0 0.0
    %v840 = vand.u32 %v86, 4294901760
    %841 = vmatmul.mubr.f32.gmra.mrb[0].mxu0 %v840
    %v842 = vpop.f32.mrb[0].mxu0
    %v843 = vadd.f32 %v736, %v842
    %v844 = vpop.f32.mrb[0].mxu0
    %845 = vmatprep.mubr.f32.mxu0 0.0
    %v846 = vand.u32 %v89, 4294901760
    %847 = vmatmul.mubr.f32.gmra.mrb[0].mxu0 %v846
    %v848 = vpop.f32.mrb[0].mxu0
    %v849 = vadd.f32 %v742, %v848
    %v850 = vpop.f32.mrb[0].mxu0
    %851 = vdwg.mxu0
    %v852 = vld [vmem:[%s3] sm:$0x7]
    %v853 = vlaneseq
    %v854 = vshrl.u32 %v853, 7
    %v855 = vsub.s32 0, %v854
    %v856 = vrot.slane %v852, %v855
    %v857 = vadd.f32 %v849, %v856
    %vm858 = vcmask 1043456
    %v859 = vsel %vm858, %v857, 0.0
    %860 = vadd.xlane.f32.xlu0 %v859
    %v861 = vpop.xlane.xlu0 %860
    %v862 = vrcp.pop 128.0
    %v863 = vmul.f32 %v861, %v862
    %v864 = vsub.f32 %v857, %v863
    %v865 = vmul.f32 %v864, %v864
    %v866 = vsel %vm858, %v865, 0.0
    %867 = vadd.xlane.f32.xlu0 %v866
    %v868 = vpop.xlane.xlu0 %867
    %v869 = vmul.f32 %v868, %v862
    %v870 = vadd.f32 %v869, 1e-05
    %v871 = vrsqrt.pop %v870
    %v872 = vmul.f32 %v864, %v871
    %v873 = vlaneseq
    %v874 = vshrl.u32 %v873, 7
    %v875 = vsub.s32 1, %v874
    %v876 = vrot.slane %v852, %v875
    %v877 = vmul.f32 %v872, %v876
    %v878 = vlaneseq
    %v879 = vshrl.u32 %v878, 7
    %v880 = vsub.s32 2, %v879
    %v881 = vrot.slane %v852, %v880
    %v882 = vadd.f32 %v877, %v881
    %vm883 = vcmp.eq.s32.totalorder %v32, 31
    %vm884 = vcmp.eq.s32.totalorder %v33, 31
    %vm885 = vcmp.eq.s32.totalorder %v34, 31
    %vm886 = vcmp.eq.s32.totalorder %v35, 31
    %v887 = vlaneseq
    %v888 = vshrl.u32 %v887, 7
    %v889 = vadd.s32 %v888, 8
    %v890 = vsel %vm883, %v888, 16
    %v891 = vsel %vm884, %v889, 16
    %v892 = vsel %vm885, %v888, 16
    %v893 = vsel %vm886, %v889, 16
    %vm894 = vcmask 7168
    %v895 = vsel %vm894, %v890, 2147483647
    %v896 = vsel %vm894, %v891, 2147483647
    %vm897 = vcmp.lt.s32.totalorder %v895, %v896
    %v898 = vsel %vm897, %v895, %v896
    %v899 = vrot.slane %v898, 4
    %vm900 = vcmp.lt.s32.totalorder %v898, %v899
    %v901 = vsel %vm900, %v898, %v899
    %v902 = vrot.slane %v901, 2
    %vm903 = vcmp.lt.s32.totalorder %v901, %v902
    %v904 = vsel %vm903, %v901, %v902
    %v905 = vrot.slane %v904, 1
    %vm906 = vcmp.lt.s32.totalorder %v904, %v905
    %v907 = vsel %vm906, %v904, %v905
    %v908 = vsel %vm894, %v892, 2147483647
    %v909 = vsel %vm894, %v893, 2147483647
    %vm910 = vcmp.lt.s32.totalorder %v908, %v909
    %v911 = vsel %vm910, %v908, %v909
    %v912 = vrot.slane %v911, 4
    %vm913 = vcmp.lt.s32.totalorder %v911, %v912
    %v914 = vsel %vm913, %v911, %v912
    %v915 = vrot.slane %v914, 2
    %vm916 = vcmp.lt.s32.totalorder %v914, %v915
    %v917 = vsel %vm916, %v914, %v915
    %v918 = vrot.slane %v917, 1
    %vm919 = vcmp.lt.s32.totalorder %v917, %v918
    %v920 = vsel %vm919, %v917, %v918
    %v921 = vsub.s32 %v888, %v907
    %v922 = vsub.s32 %v889, %v907
    %v923 = vsub.s32 %v888, %v920
    %v924 = vsub.s32 %v889, %v920
    %vm925 = vcmp.eq.s32.totalorder %v921, 0
    %vm926 = vcmp.eq.s32.totalorder %v922, 0
    %vm927 = vcmp.eq.s32.totalorder %v923, 0
    %vm928 = vcmp.eq.s32.totalorder %v924, 0
    %vm929 = vmand %vm883, %vm925
    %vm930 = vmand %vm884, %vm926
    %vm931 = vmand %vm885, %vm927
    %vm932 = vmand %vm886, %vm928
    %v933 = vsel %vm929, 1, 0
    %v934 = vsel %vm930, 1, 0
    %v935 = vsel %vm931, 1, 0
    %v936 = vsel %vm932, 1, 0
    %937 = vset.pattern.permute.xlu0 0
    %938 = vperm.xlu0 %937, %v933
    %v939 = vpop.permute.xlu0 %938
    %940 = vset.pattern.permute.xlu0 0
    %941 = vperm.xlu0 %940, %v934
    %v942 = vpop.permute.xlu0 %941
    %943 = vset.pattern.permute.xlu0 0
    %944 = vperm.xlu0 %943, %v935
    %v945 = vpop.permute.xlu0 %944
    %946 = vset.pattern.permute.xlu0 0
    %947 = vperm.xlu0 %946, %v936
    %v948 = vpop.permute.xlu0 %947
    %vm949 = vcmp.eq.s32.totalorder %v939, 1
    %vm950 = vcmp.eq.s32.totalorder %v942, 1
    %vm951 = vcmp.eq.s32.totalorder %v945, 1
    %vm952 = vcmp.eq.s32.totalorder %v948, 1
    %v953 = vlaneseq
    %v954 = vshrl.u32 %v953, 7
    %v955 = vsub.s32 0, %v954
    %v956 = vrot.slane %v882, %v955
    %v957 = vsel %vm949, %v956, %v825
    %v958 = vsel %vm950, %v956, %v831
    %v959 = vsel %vm951, %v956, %v837
    %v960 = vsel %vm952, %v956, %v843
    %vm961 = vcmp.eq.s32.totalorder %v921, 1
    %vm962 = vcmp.eq.s32.totalorder %v922, 1
    %vm963 = vcmp.eq.s32.totalorder %v923, 1
    %vm964 = vcmp.eq.s32.totalorder %v924, 1
    %vm965 = vmand %vm883, %vm961
    %vm966 = vmand %vm884, %vm962
    %vm967 = vmand %vm885, %vm963
    %vm968 = vmand %vm886, %vm964
    %v969 = vsel %vm965, 1, 0
    %v970 = vsel %vm966, 1, 0
    %v971 = vsel %vm967, 1, 0
    %v972 = vsel %vm968, 1, 0
    %973 = vset.pattern.permute.xlu0 0
    %974 = vperm.xlu0 %973, %v969
    %v975 = vpop.permute.xlu0 %974
    %976 = vset.pattern.permute.xlu0 0
    %977 = vperm.xlu0 %976, %v970
    %v978 = vpop.permute.xlu0 %977
    %979 = vset.pattern.permute.xlu0 0
    %980 = vperm.xlu0 %979, %v971
    %v981 = vpop.permute.xlu0 %980
    %982 = vset.pattern.permute.xlu0 0
    %983 = vperm.xlu0 %982, %v972
    %v984 = vpop.permute.xlu0 %983
    %vm985 = vcmp.eq.s32.totalorder %v975, 1
    %vm986 = vcmp.eq.s32.totalorder %v978, 1
    %vm987 = vcmp.eq.s32.totalorder %v981, 1
    %vm988 = vcmp.eq.s32.totalorder %v984, 1
    %v989 = vlaneseq
    %v990 = vshrl.u32 %v989, 7
    %v991 = vsub.s32 1, %v990
    %v992 = vrot.slane %v882, %v991
    %v993 = vsel %vm985, %v992, %v957
    %v994 = vsel %vm986, %v992, %v958
    %v995 = vsel %vm987, %v992, %v959
    %v996 = vsel %vm988, %v992, %v960
    %vm997 = vcmp.eq.s32.totalorder %v921, 2
    %vm998 = vcmp.eq.s32.totalorder %v922, 2
    %vm999 = vcmp.eq.s32.totalorder %v923, 2
    %vm1000 = vcmp.eq.s32.totalorder %v924, 2
    %vm1001 = vmand %vm883, %vm997
    %vm1002 = vmand %vm884, %vm998
    %vm1003 = vmand %vm885, %vm999
    %vm1004 = vmand %vm886, %vm1000
    %v1005 = vsel %vm1001, 1, 0
    %v1006 = vsel %vm1002, 1, 0
    %v1007 = vsel %vm1003, 1, 0
    %v1008 = vsel %vm1004, 1, 0
    %1009 = vset.pattern.permute.xlu0 0
    %1010 = vperm.xlu0 %1009, %v1005
    %v1011 = vpop.permute.xlu0 %1010
    %1012 = vset.pattern.permute.xlu0 0
    %1013 = vperm.xlu0 %1012, %v1006
    %v1014 = vpop.permute.xlu0 %1013
    %1015 = vset.pattern.permute.xlu0 0
    %1016 = vperm.xlu0 %1015, %v1007
    %v1017 = vpop.permute.xlu0 %1016
    %1018 = vset.pattern.permute.xlu0 0
    %1019 = vperm.xlu0 %1018, %v1008
    %v1020 = vpop.permute.xlu0 %1019
    %vm1021 = vcmp.eq.s32.totalorder %v1011, 1
    %vm1022 = vcmp.eq.s32.totalorder %v1014, 1
    %vm1023 = vcmp.eq.s32.totalorder %v1017, 1
    %vm1024 = vcmp.eq.s32.totalorder %v1020, 1
    %v1025 = vlaneseq
    %v1026 = vshrl.u32 %v1025, 7
    %v1027 = vsub.s32 2, %v1026
    %v1028 = vrot.slane %v882, %v1027
    %v1029 = vsel %vm1021, %v1028, %v993
    %v1030 = vsel %vm1022, %v1028, %v994
    %v1031 = vsel %vm1023, %v1028, %v995
    %v1032 = vsel %vm1024, %v1028, %v996
    %vm1033 = vcmp.eq.s32.totalorder %v921, 3
    %vm1034 = vcmp.eq.s32.totalorder %v922, 3
    %vm1035 = vcmp.eq.s32.totalorder %v923, 3
    %vm1036 = vcmp.eq.s32.totalorder %v924, 3
    %vm1037 = vmand %vm883, %vm1033
    %vm1038 = vmand %vm884, %vm1034
    %vm1039 = vmand %vm885, %vm1035
    %vm1040 = vmand %vm886, %vm1036
    %v1041 = vsel %vm1037, 1, 0
    %v1042 = vsel %vm1038, 1, 0
    %v1043 = vsel %vm1039, 1, 0
    %v1044 = vsel %vm1040, 1, 0
    %1045 = vset.pattern.permute.xlu0 0
    %1046 = vperm.xlu0 %1045, %v1041
    %v1047 = vpop.permute.xlu0 %1046
    %1048 = vset.pattern.permute.xlu0 0
    %1049 = vperm.xlu0 %1048, %v1042
    %v1050 = vpop.permute.xlu0 %1049
    %1051 = vset.pattern.permute.xlu0 0
    %1052 = vperm.xlu0 %1051, %v1043
    %v1053 = vpop.permute.xlu0 %1052
    %1054 = vset.pattern.permute.xlu0 0
    %1055 = vperm.xlu0 %1054, %v1044
    %v1056 = vpop.permute.xlu0 %1055
    %vm1057 = vcmp.eq.s32.totalorder %v1047, 1
    %vm1058 = vcmp.eq.s32.totalorder %v1050, 1
    %vm1059 = vcmp.eq.s32.totalorder %v1053, 1
    %vm1060 = vcmp.eq.s32.totalorder %v1056, 1
    %v1061 = vlaneseq
    %v1062 = vshrl.u32 %v1061, 7
    %v1063 = vsub.s32 3, %v1062
    %v1064 = vrot.slane %v882, %v1063
    %v1065 = vsel %vm1057, %v1064, %v1029
    %v1066 = vsel %vm1058, %v1064, %v1030
    %v1067 = vsel %vm1059, %v1064, %v1031
    %v1068 = vsel %vm1060, %v1064, %v1032
    %1069 = vst [vmem:[#allocation5] sm:$0xff] %v1065
    %1070 = vst [vmem:[#allocation5 + $0x8] sm:$0xff] %v1066
    %1071 = vst [vmem:[#allocation5 + $0x10] sm:$0xff] %v1067
    %1072 = vst [vmem:[#allocation5 + $0x18] sm:$0xff] %v1068
    // Predicated region
    $region22: #{construct_inputs_embeds.1} parent=1 // pred_check
      _
    $region23: #{construct_inputs_embeds.1} parent=1 // pred_check_branch
      %1074 = sbr.rel (0) target = $region25
    $region24: #{construct_inputs_embeds.1} parent=1 // pred_region
      %s1076 = ssub.s32 512, 512
      %1077 = vsyncadd [#allocation4], %s1076
      %s1078 = sshll.u32 [#allocation5], 4
      %s1079 = int_to_ptr.vmem [resolvable:$true] %s1078
      %1084 = dma.vmem_to_hbm [thread:$0]  %s1079, 512, %s4, [#allocation4], 128, 128, 8
    $region25: #{construct_inputs_embeds.1} parent=1 // pred_fallthru
      _
    // Predicated region
    $region26: #{construct_inputs_embeds.1} parent=1 // pred_check
      _
    $region27: #{construct_inputs_embeds.1} parent=1 // pred_check_branch
      %1086 = sbr.rel (0) target = $region29
    $region28: #{construct_inputs_embeds.1} parent=1 // pred_region
      %1087 = dma.done [#allocation4], 512
    $region29: #{construct_inputs_embeds.1} parent=1 // pred_fallthru
      _
    %1088 = vsyncpa [#allocation3], 1
    %1089 = vsyncpa [#allocation4], 1

</llo_original>
